<compile_context>
chip_gen: v6e
topology: v6e:2x2x1
jax: 0.10.0
libtpu: 0.0.40
codegen_flags: <defaults>
</compile_context>

<pallas_src>
import jax
import jax.numpy as jnp
from jax import lax
from jax.experimental import pallas as pl
from jax.experimental.pallas import tpu as pltpu


# ---------------------------------------------------------------------------
# Kernel
# ---------------------------------------------------------------------------
def sage_ids_kernel(nbr_t_ref, inv_deg_ref, xt_ref,
                    w1l_ref, w1r_ref, b1_ref,
                    w2l_ref, w2r_ref, b2_ref,
                    wout_ref, bout_ref,
                    out_ref,
                    a_t_ref, agg1_ref):
    n_pad = out_ref.shape[-1]
    k_max = nbr_t_ref.shape[0]

    # Column-block size for the A^T build / first aggregation matmul.
    tile_n = 512 if (n_pad % 512 == 0) else 128
    num_blocks = n_pad // tile_n

    xt = xt_ref[...]                                              # (F_in, N_pad)
    row_ids = lax.broadcasted_iota(jnp.int32, (n_pad, tile_n), 0)  # hoisted, loop-invariant

    # ---- Blocked build of transposed, row-normalized adjacency A^T ----
    #   A^T[j, i] = (# of slots k with nbr[i, k] == j) * inv_deg[i]
    # Padded neighbour slots / padded columns hold -1 / inv_deg 0 and never
    # contribute.  Counts accumulate in int32; one convert + scale per block.
    # The xt @ A^T_block matmul is issued in the same iteration so the MXU can
    # overlap the next block's VPU compare/add work at scale.
    for blk in range(num_blocks):                                  # static, unrolled
        cols = pl.ds(blk * tile_n, tile_n)
        nbr_blk = nbr_t_ref[:, cols]                               # (K, tile_n) int32
        counts = (row_ids == nbr_blk[0:1, :]).astype(jnp.int32)
        for k in range(1, k_max):                                  # K is tiny (max degree)
            counts = counts + (row_ids == nbr_blk[k:k + 1, :]).astype(jnp.int32)
        a_blk = counts.astype(jnp.float32) * inv_deg_ref[:, cols]  # (N_pad, tile_n)
        a_t_ref[:, cols] = a_blk
        agg1_ref[:, cols] = jnp.dot(xt, a_blk,
                                    preferred_element_type=jnp.float32)  # (A @ x)^T block

    # ---- SAGEConv 1: two dots summed (no concat copy), bias, ReLU ----
    h1_t = jnp.maximum(
        jnp.dot(w1l_ref[...], agg1_ref[...], preferred_element_type=jnp.float32)
        + jnp.dot(w1r_ref[...], xt, preferred_element_type=jnp.float32)
        + b1_ref[...],
        0.0)                                                       # (H, N_pad)

    # TODO(synk): dropout (use_dropout=True path) not implemented; the module
    # default is use_dropout=False, so the forward semantics here are exact.

    # ---- SAGEConv 2: aggregate the O-wide matrix:  A @ (h1 @ W2_l) ----
    lin_l = jnp.dot(w2l_ref[...], h1_t, preferred_element_type=jnp.float32)  # (O, N_pad)
    lin_r = jnp.dot(w2r_ref[...], h1_t, preferred_element_type=jnp.float32)  # (O, N_pad)
    agg2_t = jnp.dot(lin_l, a_t_ref[...], preferred_element_type=jnp.float32)
    h2_t = jnp.maximum(agg2_t + lin_r + b2_ref[...], 0.0)          # (O, N_pad)

    # ---- output layer, lane-dense (1, N_pad) store ----
    out_ref[...] = (jnp.dot(wout_ref[...], h2_t, preferred_element_type=jnp.float32)
                    + bout_ref[...])


# ---------------------------------------------------------------------------
# One-time preprocessing (cache across forward calls — graph/params are static)
# ---------------------------------------------------------------------------
def prepare_graph(edge_index, num_nodes, max_deg=None, lane_pad=128):
    """Padded neighbour table (K, N_pad) int32 and inverse degrees (1, N_pad) f32.

    max_deg defaults to the true maximum in-degree (duplicates kept, matching
    the multiplicity semantics of the dense reference).  If provided, it is
    checked so edges are never silently dropped.
    """
    src = jnp.asarray(edge_index[0], jnp.int32)
    dst = jnp.asarray(edge_index[1], jnp.int32)

    deg = jnp.zeros((num_nodes,), jnp.float32).at[dst].add(1.0)
    true_max = int(jnp.max(deg)) if num_nodes > 0 else 0
    if max_deg is None:
        max_deg = max(true_max, 1)
    else:
        assert max_deg >= true_max, (
            f"max_deg={max_deg} < true max in-degree {true_max}: edges would be dropped")

    order = jnp.argsort(dst)                                       # stable
    dst_s = dst[order]
    src_s = src[order]
    seg_start = jnp.searchsorted(dst_s, jnp.arange(num_nodes, dtype=jnp.int32))
    slot = jnp.arange(dst_s.shape[0], dtype=jnp.int32) - seg_start[dst_s].astype(jnp.int32)
    nbr = jnp.full((num_nodes, max_deg), -1, jnp.int32)
    nbr = nbr.at[dst_s, slot].set(src_s)
    inv_deg = 1.0 / jnp.maximum(deg, 1.0)

    n_pad = ((num_nodes + lane_pad - 1) // lane_pad) * lane_pad
    nbr_t = jnp.full((max_deg, n_pad), -1, jnp.int32).at[:, :num_nodes].set(nbr.T)
    inv_deg_p = jnp.zeros((1, n_pad), jnp.float32).at[0, :num_nodes].set(inv_deg)
    return {"nbr_t": nbr_t, "inv_deg": inv_deg_p}


def prepare_params(params):
    """Transpose / reshape weights once into the feature-major kernel layout."""
    return {
        "w1l_t": params["w1_l"].T,                     # (H, F_in)
        "w1r_t": params["w1_r"].T,                     # (H, F_in)
        "b1":    params["b1"].reshape(-1, 1),          # (H, 1)
        "w2l_t": params["w2_l"].T,                     # (O, H)
        "w2r_t": params["w2_r"].T,                     # (O, H)
        "b2":    params["b2"].reshape(-1, 1),          # (O, 1)
        "wout_t": params["w_out"].T,                   # (1, O)
        "bout":  params["b_out"].reshape(1, 1),        # (1, 1)
    }


# ---------------------------------------------------------------------------
# Per-call forward (jitted): pad x, launch kernel, slice back
# ---------------------------------------------------------------------------
@jax.jit
def sage_ids_forward(x, graph, pparams):
    n, f_in = x.shape
    n_pad = graph["nbr_t"].shape[1]
    k_max = graph["nbr_t"].shape[0]
    h_dim = pparams["w1l_t"].shape[0]
    o_dim = pparams["w2l_t"].shape[0]

    # Feature-major, lane-padded node features.  (For large graphs, store x
    # feature-major upstream and keep the (1, N_pad) output layout downstream
    # to avoid these two HBM passes — pure layout plumbing.)
    xt = jnp.zeros((f_in, n_pad), jnp.float32).at[:, :n].set(x.T)

    args = (graph["nbr_t"], graph["inv_deg"], xt,
            pparams["w1l_t"], pparams["w1r_t"], pparams["b1"],
            pparams["w2l_t"], pparams["w2r_t"], pparams["b2"],
            pparams["wout_t"], pparams["bout"])

    vmem = pl.BlockSpec(memory_space=pltpu.MemorySpace.VMEM)

    flops = 2 * (k_max * n_pad * n_pad            # adjacency build (compare+add)
                 + f_in * n_pad * n_pad           # A @ x
                 + 2 * h_dim * f_in * n_pad       # layer-1 two dots
                 + 2 * o_dim * h_dim * n_pad      # layer-2 two dots
                 + o_dim * n_pad * n_pad          # A @ (h1 @ W2_l)
                 + o_dim * n_pad)                 # output layer
    bytes_accessed = 4 * sum(int(jnp.size(a)) for a in args) + 4 * n_pad

    out_t = pl.pallas_call(
        sage_ids_kernel,
        out_shape=jax.ShapeDtypeStruct((1, n_pad), jnp.float32),
        in_specs=[vmem] * len(args),
        out_specs=vmem,
        scratch_shapes=[pltpu.VMEM((n_pad, n_pad), jnp.float32),   # A^T
                        pltpu.VMEM((f_in, n_pad), jnp.float32)],   # (A @ x)^T
        cost_estimate=pl.CostEstimate(flops=int(flops), transcendentals=0,
                                      bytes_accessed=int(bytes_accessed)),
    )(*args)

    return out_t[:, :n].T                                           # (N, 1), module layout


# ---------------------------------------------------------------------------
# Pure-JAX reference (correctness only)
# ---------------------------------------------------------------------------
def edge_index_to_mean_adj(edge_index, num_nodes):
    src = edge_index[0]
    dst = edge_index[1]
    adj = jnp.zeros((num_nodes, num_nodes), jnp.float32)
    adj = adj.at[dst, src].add(1.0)
    deg = jnp.sum(adj, axis=1, keepdims=True)
    return adj / jnp.maximum(deg, 1.0)


def sage_ids_reference(x, edge_index, params):
    a = edge_index_to_mean_adj(edge_index, x.shape[0])
    h1 = jnp.maximum(a @ x @ params["w1_l"] + params["b1"] + x @ params["w1_r"], 0.0)
    h2 = jnp.maximum(a @ h1 @ params["w2_l"] + params["b2"] + h1 @ params["w2_r"], 0.0)
    return h2 @ params["w_out"] + params["b_out"]


def init_params(key, input_dim, hidden_dim, output_dim):
    ks = jax.random.split(key, 7)
    scale = 0.1
    return {
        # SAGEConv1: lin_l (with bias) on aggregated neighbours, lin_r (no bias) on root
        "w1_l": scale * jax.random.normal(ks[0], (input_dim, hidden_dim), jnp.float32),
        "w1_r": scale * jax.random.normal(ks[1], (input_dim, hidden_dim), jnp.float32),
        "b1":   scale * jax.random.normal(ks[2], (1, hidden_dim), jnp.float32),
        # SAGEConv2
        "w2_l": scale * jax.random.normal(ks[3], (hidden_dim, output_dim), jnp.float32),
        "w2_r": scale * jax.random.normal(ks[4], (hidden_dim, output_dim), jnp.float32),
        "b2":   scale * jax.random.normal(ks[5], (1, output_dim), jnp.float32),
        # output_layer: Linear(output_dim, 1)
        "w_out": scale * jax.random.normal(ks[6], (output_dim, 1), jnp.float32),
        "b_out": jnp.zeros((1, 1), jnp.float32),
    }


if __name__ == "__main__":
    key = jax.random.PRNGKey(0)
    k_x, k_e, k_p = jax.random.split(key, 3)

    num_nodes = 32
    input_dim, hidden_dim, output_dim = 16, 32, 16
    k_neighbors = 4

    # Node features
    x = jax.random.normal(k_x, (num_nodes, input_dim), jnp.float32)

    # Deterministic synthetic k-NN-style edge_index (2, E): row0 = src, row1 = dst
    dst = jnp.repeat(jnp.arange(num_nodes), k_neighbors)
    src = jax.random.randint(k_e, (num_nodes * k_neighbors,), 0, num_nodes)
    edge_index = jnp.stack([src, dst]).astype(jnp.int32)

    params = init_params(k_p, input_dim, hidden_dim, output_dim)

    # One-time, cached preprocessing (graph + weight layout), per perf review.
    graph = prepare_graph(edge_index, num_nodes)
    pparams = prepare_params(params)

    # Forward (run twice: second call is the cached, compiled per-call path).
    out = sage_ids_forward(x, graph, pparams)
    out = jax.block_until_ready(sage_ids_forward(x, graph, pparams))

    ref = sage_ids_reference(x, edge_index, params)
    assert out.shape == (num_nodes, 1)
    assert jnp.allclose(out, ref, atol=1e-5, rtol=1e-5), float(jnp.max(jnp.abs(out - ref)))

    print("KERNEL_OK")
</pallas_src>

<mosaic_0001>
module attributes {stable_mosaic.version = 11 : i64} {
  func.func @sage_ids_kernel(%arg0: memref<4x128xi32, #tpu.memory_space<vmem>>, %arg1: memref<1x128xf32, #tpu.memory_space<vmem>>, %arg2: memref<16x128xf32, #tpu.memory_space<vmem>>, %arg3: memref<32x16xf32, #tpu.memory_space<vmem>>, %arg4: memref<32x16xf32, #tpu.memory_space<vmem>>, %arg5: memref<32x1xf32, #tpu.memory_space<vmem>>, %arg6: memref<16x32xf32, #tpu.memory_space<vmem>>, %arg7: memref<16x32xf32, #tpu.memory_space<vmem>>, %arg8: memref<16x1xf32, #tpu.memory_space<vmem>>, %arg9: memref<1x16xf32, #tpu.memory_space<vmem>>, %arg10: memref<1x1xf32, #tpu.memory_space<vmem>>, %arg11: memref<1x128xf32, #tpu.memory_space<vmem>>, %arg12: memref<128x128xf32, #tpu.memory_space<vmem>>, %arg13: memref<16x128xf32, #tpu.memory_space<vmem>>) attributes {dimension_semantics = [], scalar_prefetch = 0 : i64, scratch_operands = 2 : i64, tpu.core_type = #tpu.core_type<tc>} {
    %c0 = arith.constant 0 : index
    %c0_0 = arith.constant 0 : index
    %0 = vector.load %arg2[%c0, %c0_0] : memref<16x128xf32, #tpu.memory_space<vmem>>, vector<16x128xf32>
    %1 = tpu.iota {dimensions = array<i32: 0>} : vector<128x128xi32>
    %c0_1 = arith.constant 0 : index
    %c0_2 = arith.constant 0 : index
    %2 = vector.load %arg0[%c0_1, %c0_2] : memref<4x128xi32, #tpu.memory_space<vmem>>, vector<4x128xi32>
    %3 = vector.extract_strided_slice %2 {offsets = [0, 0], sizes = [1, 128], strides = [1, 1]} : vector<4x128xi32> to vector<1x128xi32>
    %4 = vector.broadcast %3 : vector<1x128xi32> to vector<128x128xi32>
    %5 = arith.cmpi eq, %1, %4 : vector<128x128xi32>
    %6 = arith.extui %5 : vector<128x128xi1> to vector<128x128xi32>
    %7 = vector.extract_strided_slice %2 {offsets = [1, 0], sizes = [1, 128], strides = [1, 1]} : vector<4x128xi32> to vector<1x128xi32>
    %8 = vector.broadcast %7 : vector<1x128xi32> to vector<128x128xi32>
    %9 = arith.cmpi eq, %1, %8 : vector<128x128xi32>
    %10 = arith.extui %9 : vector<128x128xi1> to vector<128x128xi32>
    %11 = arith.addi %6, %10 : vector<128x128xi32>
    %12 = vector.extract_strided_slice %2 {offsets = [2, 0], sizes = [1, 128], strides = [1, 1]} : vector<4x128xi32> to vector<1x128xi32>
    %13 = vector.broadcast %12 : vector<1x128xi32> to vector<128x128xi32>
    %14 = arith.cmpi eq, %1, %13 : vector<128x128xi32>
    %15 = arith.extui %14 : vector<128x128xi1> to vector<128x128xi32>
    %16 = arith.addi %11, %15 : vector<128x128xi32>
    %17 = vector.extract_strided_slice %2 {offsets = [3, 0], sizes = [1, 128], strides = [1, 1]} : vector<4x128xi32> to vector<1x128xi32>
    %18 = vector.broadcast %17 : vector<1x128xi32> to vector<128x128xi32>
    %19 = arith.cmpi eq, %1, %18 : vector<128x128xi32>
    %20 = arith.extui %19 : vector<128x128xi1> to vector<128x128xi32>
    %21 = arith.addi %16, %20 : vector<128x128xi32>
    %22 = arith.sitofp %21 : vector<128x128xi32> to vector<128x128xf32>
    %c0_3 = arith.constant 0 : index
    %c0_4 = arith.constant 0 : index
    %23 = vector.load %arg1[%c0_3, %c0_4] : memref<1x128xf32, #tpu.memory_space<vmem>>, vector<1x128xf32>
    %24 = vector.broadcast %23 : vector<1x128xf32> to vector<128x128xf32>
    %25 = arith.mulf %22, %24 : vector<128x128xf32>
    %c0_5 = arith.constant 0 : index
    %c0_6 = arith.constant 0 : index
    %26 = vector.load %arg12[%c0_5, %c0_6] : memref<128x128xf32, #tpu.memory_space<vmem>>, vector<128x128xf32>
    tpu.vector_store %arg12[%c0_5, %c0_6], %25 {strides = array<i32>} : memref<128x128xf32, #tpu.memory_space<vmem>>, vector<128x128xf32>,
    %cst = arith.constant dense<0.000000e+00> : vector<16x128xf32>
    %27 = tpu.matmul %0, %25, %cst {dimension_numbers = #tpu.dot_dimension_numbers<[1], [0], [0], [1], [0, 0, 1, 1], [], []>} : vector<16x128xf32>, vector<128x128xf32>, vector<16x128xf32> -> vector<16x128xf32>
    %c0_7 = arith.constant 0 : index
    %c0_8 = arith.constant 0 : index
    %28 = vector.load %arg13[%c0_7, %c0_8] : memref<16x128xf32, #tpu.memory_space<vmem>>, vector<16x128xf32>
    tpu.vector_store %arg13[%c0_7, %c0_8], %27 {strides = array<i32>} : memref<16x128xf32, #tpu.memory_space<vmem>>, vector<16x128xf32>,
    %c0_9 = arith.constant 0 : index
    %c0_10 = arith.constant 0 : index
    %29 = vector.load %arg3[%c0_9, %c0_10] : memref<32x16xf32, #tpu.memory_space<vmem>>, vector<32x16xf32>
    %c0_11 = arith.constant 0 : index
    %c0_12 = arith.constant 0 : index
    %30 = vector.load %arg13[%c0_11, %c0_12] : memref<16x128xf32, #tpu.memory_space<vmem>>, vector<16x128xf32>
    %cst_13 = arith.constant dense<0.000000e+00> : vector<32x128xf32>
    %31 = tpu.matmul %29, %30, %cst_13 {dimension_numbers = #tpu.dot_dimension_numbers<[1], [0], [0], [1], [0, 0, 1, 1], [], []>} : vector<32x16xf32>, vector<16x128xf32>, vector<32x128xf32> -> vector<32x128xf32>
    %c0_14 = arith.constant 0 : index
    %c0_15 = arith.constant 0 : index
    %32 = vector.load %arg4[%c0_14, %c0_15] : memref<32x16xf32, #tpu.memory_space<vmem>>, vector<32x16xf32>
    %cst_16 = arith.constant dense<0.000000e+00> : vector<32x128xf32>
    %33 = tpu.matmul %32, %0, %cst_16 {dimension_numbers = #tpu.dot_dimension_numbers<[1], [0], [0], [1], [0, 0, 1, 1], [], []>} : vector<32x16xf32>, vector<16x128xf32>, vector<32x128xf32> -> vector<32x128xf32>
    %34 = arith.addf %31, %33 : vector<32x128xf32>
    %c0_17 = arith.constant 0 : index
    %c0_18 = arith.constant 0 : index
    %35 = vector.load %arg5[%c0_17, %c0_18] : memref<32x1xf32, #tpu.memory_space<vmem>>, vector<32x1xf32>
    %36 = vector.broadcast %35 : vector<32x1xf32> to vector<32x128xf32>
    %37 = arith.addf %34, %36 : vector<32x128xf32>
    %cst_19 = arith.constant 0.000000e+00 : f32
    %38 = vector.broadcast %cst_19 : f32 to vector<32x128xf32>
    %39 = arith.maximumf %37, %38 : vector<32x128xf32>
    %c0_20 = arith.constant 0 : index
    %c0_21 = arith.constant 0 : index
    %40 = vector.load %arg6[%c0_20, %c0_21] : memref<16x32xf32, #tpu.memory_space<vmem>>, vector<16x32xf32>
    %cst_22 = arith.constant dense<0.000000e+00> : vector<16x128xf32>
    %41 = tpu.matmul %40, %39, %cst_22 {dimension_numbers = #tpu.dot_dimension_numbers<[1], [0], [0], [1], [0, 0, 1, 1], [], []>} : vector<16x32xf32>, vector<32x128xf32>, vector<16x128xf32> -> vector<16x128xf32>
    %c0_23 = arith.constant 0 : index
    %c0_24 = arith.constant 0 : index
    %42 = vector.load %arg7[%c0_23, %c0_24] : memref<16x32xf32, #tpu.memory_space<vmem>>, vector<16x32xf32>
    %cst_25 = arith.constant dense<0.000000e+00> : vector<16x128xf32>
    %43 = tpu.matmul %42, %39, %cst_25 {dimension_numbers = #tpu.dot_dimension_numbers<[1], [0], [0], [1], [0, 0, 1, 1], [], []>} : vector<16x32xf32>, vector<32x128xf32>, vector<16x128xf32> -> vector<16x128xf32>
    %c0_26 = arith.constant 0 : index
    %c0_27 = arith.constant 0 : index
    %44 = vector.load %arg12[%c0_26, %c0_27] : memref<128x128xf32, #tpu.memory_space<vmem>>, vector<128x128xf32>
    %cst_28 = arith.constant dense<0.000000e+00> : vector<16x128xf32>
    %45 = tpu.matmul %41, %44, %cst_28 {dimension_numbers = #tpu.dot_dimension_numbers<[1], [0], [0], [1], [0, 0, 1, 1], [], []>} : vector<16x128xf32>, vector<128x128xf32>, vector<16x128xf32> -> vector<16x128xf32>
    %46 = arith.addf %45, %43 : vector<16x128xf32>
    %c0_29 = arith.constant 0 : index
    %c0_30 = arith.constant 0 : index
    %47 = vector.load %arg8[%c0_29, %c0_30] : memref<16x1xf32, #tpu.memory_space<vmem>>, vector<16x1xf32>
    %48 = vector.broadcast %47 : vector<16x1xf32> to vector<16x128xf32>
    %49 = arith.addf %46, %48 : vector<16x128xf32>
    %cst_31 = arith.constant 0.000000e+00 : f32
    %50 = vector.broadcast %cst_31 : f32 to vector<16x128xf32>
    %51 = arith.maximumf %49, %50 : vector<16x128xf32>
    %c0_32 = arith.constant 0 : index
    %c0_33 = arith.constant 0 : index
    %52 = vector.load %arg9[%c0_32, %c0_33] : memref<1x16xf32, #tpu.memory_space<vmem>>, vector<1x16xf32>
    %cst_34 = arith.constant dense<0.000000e+00> : vector<1x128xf32>
    %53 = tpu.matmul %52, %51, %cst_34 {dimension_numbers = #tpu.dot_dimension_numbers<[1], [0], [0], [1], [0, 0, 1, 1], [], []>} : vector<1x16xf32>, vector<16x128xf32>, vector<1x128xf32> -> vector<1x128xf32>
    %c0_35 = arith.constant 0 : index
    %c0_36 = arith.constant 0 : index
    %54 = vector.load %arg10[%c0_35, %c0_36] : memref<1x1xf32, #tpu.memory_space<vmem>>, vector<1x1xf32>
    %55 = vector.broadcast %54 : vector<1x1xf32> to vector<1x128xf32>
    %56 = arith.addf %53, %55 : vector<1x128xf32>
    %c0_37 = arith.constant 0 : index
    %c0_38 = arith.constant 0 : index
    %57 = vector.load %arg11[%c0_37, %c0_38] : memref<1x128xf32, #tpu.memory_space<vmem>>, vector<1x128xf32>
    tpu.vector_store %arg11[%c0_37, %c0_38], %56 {strides = array<i32>} : memref<1x128xf32, #tpu.memory_space<vmem>>, vector<1x128xf32>,
    return
  }
}

</mosaic_0001>

<llo_original>
// kernel: sage_ids_forward.1
$region0: #{sage_ids_forward.1}
  #allocation0 [shape = 'u32[]', space=smem, size = 0x4, offset = 0x4, fixed_abs, tag = 'smem constant byte address 0x4 - core index']
  #allocation1 [shape = 'u32[144,128]{1,0:T(1,128)}', space=vmem, size = 0x12000, scoped, tag = 'internal scratch']
  #allocation2 [shape = 'f32[128,128]{1,0:T(8,128)}', space=vmem, size = 0x10000, scoped, tag = 'scratch operand']
  #allocation3 [shape = 'f32[16,128]{1,0:T(8,128)}', space=vmem, size = 0x2000, scoped, tag = 'scratch operand']
  #allocation4 [shape = 'f32[1,1]{1,0:T(1,128)S(1)}', space=vmem, size = 0x200, scoped, tag = 'scoped memory for sage_ids_forward.1']
  %s0 = inlined_call_operand.vmem [shape: s32[4,128], index: 0, kind: input, shape index: {}]
  %s1 = inlined_call_operand.vmem [shape: f32[1,128], index: 1, kind: input, shape index: {}]
  %s2 = inlined_call_operand.vmem [shape: f32[16,128], index: 2, kind: input, shape index: {}]
  %s3 = inlined_call_operand.vmem [shape: f32[32,16], index: 3, kind: input, shape index: {}]
  %s4 = inlined_call_operand.vmem [shape: f32[32,16], index: 4, kind: input, shape index: {}]
  %s5 = inlined_call_operand.vmem [shape: f32[32,1], index: 5, kind: input, shape index: {}]
  %s6 = inlined_call_operand.vmem [shape: f32[16,32], index: 6, kind: input, shape index: {}]
  %s7 = inlined_call_operand.vmem [shape: f32[16,32], index: 7, kind: input, shape index: {}]
  %s8 = inlined_call_operand.vmem [shape: f32[16,1], index: 8, kind: input, shape index: {}]
  %s9 = inlined_call_operand.vmem [shape: f32[1,16], index: 9, kind: input, shape index: {}]
  %s10 = inlined_call_operand.<no memory space> [shape: f32[1,1], index: 10, kind: input, shape index: {}]
  %s11 = inlined_call_operand.vmem [shape: f32[1,128], index: 11, kind: output, shape index: {}]
  %s12 = sld [smem:[#allocation0]]
  $region54: #{sage_ids_forward.1} parent=0
    _
  %s14 = ssub.s32 1, %s12
  %s15 = scalar_select 0, %s14, %s12
  %v16 = vstv %s10
  %17 = vst [vmem:[#allocation4] sm:$0x1] %v16
  // Predicated region
  $region2: #{sage_ids_forward.1} parent=0 // pred_check
    _
  $region3: #{sage_ids_forward.1} parent=0 // pred_check_branch
    %19 = sbr.rel (0) target = $region5
  $region4: #{sage_ids_forward.1} parent=0 // pred_region
    _
  $region5: #{sage_ids_forward.1} parent=0 // pred_fallthru
    _
  // Predicated region
  $region6: #{sage_ids_forward.1} parent=0 // pred_check
    _
  $region7: #{sage_ids_forward.1} parent=0 // pred_check_branch
    %21 = sbr.rel (0) target = $region9
  $region8: #{sage_ids_forward.1} parent=0 // pred_region
    _
  $region9: #{sage_ids_forward.1} parent=0 // pred_fallthru
    _
  // Predicated region
  $region10: #{sage_ids_forward.1} parent=0 // pred_check
    _
  $region11: #{sage_ids_forward.1} parent=0 // pred_check_branch
    %23 = sbr.rel (0) target = $region13
  $region12: #{sage_ids_forward.1} parent=0 // pred_region
    _
  $region13: #{sage_ids_forward.1} parent=0 // pred_fallthru
    _
  // Predicated region
  $region14: #{sage_ids_forward.1} parent=0 // pred_check
    _
  $region15: #{sage_ids_forward.1} parent=0 // pred_check_branch
    %25 = sbr.rel (0) target = $region17
  $region16: #{sage_ids_forward.1} parent=0 // pred_region
    _
  $region17: #{sage_ids_forward.1} parent=0 // pred_fallthru
    _
  // Predicated region
  $region18: #{sage_ids_forward.1} parent=0 // pred_check
    _
  $region19: #{sage_ids_forward.1} parent=0 // pred_check_branch
    %27 = sbr.rel (0) target = $region21
  $region20: #{sage_ids_forward.1} parent=0 // pred_region
    _
  $region21: #{sage_ids_forward.1} parent=0 // pred_fallthru
    _
  // Predicated region
  $region22: #{sage_ids_forward.1} parent=0 // pred_check
    _
  $region23: #{sage_ids_forward.1} parent=0 // pred_check_branch
    %29 = sbr.rel (0) target = $region25
  $region24: #{sage_ids_forward.1} parent=0 // pred_region
    _
  $region25: #{sage_ids_forward.1} parent=0 // pred_fallthru
    _
  // Predicated region
  $region26: #{sage_ids_forward.1} parent=0 // pred_check
    _
  $region27: #{sage_ids_forward.1} parent=0 // pred_check_branch
    %31 = sbr.rel (0) target = $region29
  $region28: #{sage_ids_forward.1} parent=0 // pred_region
    _
  $region29: #{sage_ids_forward.1} parent=0 // pred_fallthru
    _
  // Predicated region
  $region30: #{sage_ids_forward.1} parent=0 // pred_check
    _
  $region31: #{sage_ids_forward.1} parent=0 // pred_check_branch
    %33 = sbr.rel (0) target = $region33
  $region32: #{sage_ids_forward.1} parent=0 // pred_region
    _
  $region33: #{sage_ids_forward.1} parent=0 // pred_fallthru
    _
  // Predicated region
  $region34: #{sage_ids_forward.1} parent=0 // pred_check
    _
  $region35: #{sage_ids_forward.1} parent=0 // pred_check_branch
    %35 = sbr.rel (0) target = $region37
  $region36: #{sage_ids_forward.1} parent=0 // pred_region
    _
  $region37: #{sage_ids_forward.1} parent=0 // pred_fallthru
    _
  // Predicated region
  $region38: #{sage_ids_forward.1} parent=0 // pred_check
    _
  $region39: #{sage_ids_forward.1} parent=0 // pred_check_branch
    %37 = sbr.rel (0) target = $region41
  $region40: #{sage_ids_forward.1} parent=0 // pred_region
    _
  $region41: #{sage_ids_forward.1} parent=0 // pred_fallthru
    _
  // Predicated region
  $region42: #{sage_ids_forward.1} parent=0 // pred_check
    _
  $region43: #{sage_ids_forward.1} parent=0 // pred_check_branch
    %39 = sbr.rel (0) target = $region45
  $region44: #{sage_ids_forward.1} parent=0 // pred_region
    _
  $region45: #{sage_ids_forward.1} parent=0 // pred_fallthru
    _
  %v40 = vld [vmem:[%s2] sm:$0xff]
  %v41 = vld [vmem:[%s2 + $0x8] sm:$0xff]
  %v42 = vlaneseq
  %v43 = vshrl.u32 %v42, 7
  %v44 = vadd.s32 %v43, 8
  %v45 = vadd.s32 %v43, 16
  %v46 = vadd.s32 %v43, 24
  %v47 = vadd.s32 %v43, 32
  %v48 = vadd.s32 %v43, 40
  %v49 = vadd.s32 %v43, 48
  %v50 = vadd.s32 %v43, 56
  %v51 = vadd.s32 %v43, 64
  %v52 = vadd.s32 %v43, 72
  %v53 = vadd.s32 %v43, 80
  %v54 = vadd.s32 %v43, 88
  %v55 = vadd.s32 %v43, 96
  %v56 = vadd.s32 %v43, 104
  %v57 = vadd.s32 %v43, 112
  %v58 = vadd.s32 %v43, 120
  %v59 = vld [vmem:[%s0] sm:$0xf]
  %v60 = vlaneseq
  %v61 = vshrl.u32 %v60, 7
  %v62 = vsub.s32 0, %v61
  %v63 = vrot.slane %v59, %v62
  %vm64 = vcmp.eq.s32.totalorder %v43, %v63
  %vm65 = vcmp.eq.s32.totalorder %v44, %v63
  %vm66 = vcmp.eq.s32.totalorder %v45, %v63
  %vm67 = vcmp.eq.s32.totalorder %v46, %v63
  %vm68 = vcmp.eq.s32.totalorder %v47, %v63
  %vm69 = vcmp.eq.s32.totalorder %v48, %v63
  %vm70 = vcmp.eq.s32.totalorder %v49, %v63
  %vm71 = vcmp.eq.s32.totalorder %v50, %v63
  %vm72 = vcmp.eq.s32.totalorder %v51, %v63
  %vm73 = vcmp.eq.s32.totalorder %v52, %v63
  %vm74 = vcmp.eq.s32.totalorder %v53, %v63
  %vm75 = vcmp.eq.s32.totalorder %v54, %v63
  %vm76 = vcmp.eq.s32.totalorder %v55, %v63
  %vm77 = vcmp.eq.s32.totalorder %v56, %v63
  %vm78 = vcmp.eq.s32.totalorder %v57, %v63
  %vm79 = vcmp.eq.s32.totalorder %v58, %v63
  %v80 = vsel %vm64, 1, 0
  %v81 = vsel %vm65, 1, 0
  %v82 = vsel %vm66, 1, 0
  %v83 = vsel %vm67, 1, 0
  %v84 = vsel %vm68, 1, 0
  %v85 = vsel %vm69, 1, 0
  %v86 = vsel %vm70, 1, 0
  %v87 = vsel %vm71, 1, 0
  %v88 = vsel %vm72, 1, 0
  %v89 = vsel %vm73, 1, 0
  %v90 = vsel %vm74, 1, 0
  %v91 = vsel %vm75, 1, 0
  %v92 = vsel %vm76, 1, 0
  %v93 = vsel %vm77, 1, 0
  %v94 = vsel %vm78, 1, 0
  %v95 = vsel %vm79, 1, 0
  %v96 = vlaneseq
  %v97 = vshrl.u32 %v96, 7
  %v98 = vsub.s32 1, %v97
  %v99 = vrot.slane %v59, %v98
  %vm100 = vcmp.eq.s32.totalorder %v43, %v99
  %vm101 = vcmp.eq.s32.totalorder %v44, %v99
  %vm102 = vcmp.eq.s32.totalorder %v45, %v99
  %vm103 = vcmp.eq.s32.totalorder %v46, %v99
  %vm104 = vcmp.eq.s32.totalorder %v47, %v99
  %vm105 = vcmp.eq.s32.totalorder %v48, %v99
  %vm106 = vcmp.eq.s32.totalorder %v49, %v99
  %vm107 = vcmp.eq.s32.totalorder %v50, %v99
  %vm108 = vcmp.eq.s32.totalorder %v51, %v99
  %vm109 = vcmp.eq.s32.totalorder %v52, %v99
  %vm110 = vcmp.eq.s32.totalorder %v53, %v99
  %vm111 = vcmp.eq.s32.totalorder %v54, %v99
  %vm112 = vcmp.eq.s32.totalorder %v55, %v99
  %vm113 = vcmp.eq.s32.totalorder %v56, %v99
  %vm114 = vcmp.eq.s32.totalorder %v57, %v99
  %vm115 = vcmp.eq.s32.totalorder %v58, %v99
  %v116 = vsel %vm100, 1, 0
  %v117 = vsel %vm101, 1, 0
  %v118 = vsel %vm102, 1, 0
  %v119 = vsel %vm103, 1, 0
  %v120 = vsel %vm104, 1, 0
  %v121 = vsel %vm105, 1, 0
  %v122 = vsel %vm106, 1, 0
  %v123 = vsel %vm107, 1, 0
  %v124 = vsel %vm108, 1, 0
  %v125 = vsel %vm109, 1, 0
  %v126 = vsel %vm110, 1, 0
  %v127 = vsel %vm111, 1, 0
  %v128 = vsel %vm112, 1, 0
  %v129 = vsel %vm113, 1, 0
  %v130 = vsel %vm114, 1, 0
  %v131 = vsel %vm115, 1, 0
  %v132 = vadd.s32 %v80, %v116
  %v133 = vadd.s32 %v81, %v117
  %v134 = vadd.s32 %v82, %v118
  %v135 = vadd.s32 %v83, %v119
  %v136 = vadd.s32 %v84, %v120
  %v137 = vadd.s32 %v85, %v121
  %v138 = vadd.s32 %v86, %v122
  %v139 = vadd.s32 %v87, %v123
  %v140 = vadd.s32 %v88, %v124
  %v141 = vadd.s32 %v89, %v125
  %v142 = vadd.s32 %v90, %v126
  %v143 = vadd.s32 %v91, %v127
  %v144 = vadd.s32 %v92, %v128
  %v145 = vadd.s32 %v93, %v129
  %v146 = vadd.s32 %v94, %v130
  %v147 = vadd.s32 %v95, %v131
  %v148 = vlaneseq
  %v149 = vshrl.u32 %v148, 7
  %v150 = vsub.s32 2, %v149
  %v151 = vrot.slane %v59, %v150
  %vm152 = vcmp.eq.s32.totalorder %v43, %v151
  %vm153 = vcmp.eq.s32.totalorder %v44, %v151
  %vm154 = vcmp.eq.s32.totalorder %v45, %v151
  %vm155 = vcmp.eq.s32.totalorder %v46, %v151
  %vm156 = vcmp.eq.s32.totalorder %v47, %v151
  %vm157 = vcmp.eq.s32.totalorder %v48, %v151
  %vm158 = vcmp.eq.s32.totalorder %v49, %v151
  %vm159 = vcmp.eq.s32.totalorder %v50, %v151
  %vm160 = vcmp.eq.s32.totalorder %v51, %v151
  %vm161 = vcmp.eq.s32.totalorder %v52, %v151
  %vm162 = vcmp.eq.s32.totalorder %v53, %v151
  %vm163 = vcmp.eq.s32.totalorder %v54, %v151
  %vm164 = vcmp.eq.s32.totalorder %v55, %v151
  %vm165 = vcmp.eq.s32.totalorder %v56, %v151
  %vm166 = vcmp.eq.s32.totalorder %v57, %v151
  %vm167 = vcmp.eq.s32.totalorder %v58, %v151
  %v168 = vsel %vm152, 1, 0
  %v169 = vsel %vm153, 1, 0
  %v170 = vsel %vm154, 1, 0
  %v171 = vsel %vm155, 1, 0
  %v172 = vsel %vm156, 1, 0
  %v173 = vsel %vm157, 1, 0
  %v174 = vsel %vm158, 1, 0
  %v175 = vsel %vm159, 1, 0
  %v176 = vsel %vm160, 1, 0
  %v177 = vsel %vm161, 1, 0
  %v178 = vsel %vm162, 1, 0
  %v179 = vsel %vm163, 1, 0
  %v180 = vsel %vm164, 1, 0
  %v181 = vsel %vm165, 1, 0
  %v182 = vsel %vm166, 1, 0
  %v183 = vsel %vm167, 1, 0
  %v184 = vadd.s32 %v132, %v168
  %v185 = vadd.s32 %v133, %v169
  %v186 = vadd.s32 %v134, %v170
  %v187 = vadd.s32 %v135, %v171
  %v188 = vadd.s32 %v136, %v172
  %v189 = vadd.s32 %v137, %v173
  %v190 = vadd.s32 %v138, %v174
  %v191 = vadd.s32 %v139, %v175
  %v192 = vadd.s32 %v140, %v176
  %v193 = vadd.s32 %v141, %v177
  %v194 = vadd.s32 %v142, %v178
  %v195 = vadd.s32 %v143, %v179
  %v196 = vadd.s32 %v144, %v180
  %v197 = vadd.s32 %v145, %v181
  %v198 = vadd.s32 %v146, %v182
  %v199 = vadd.s32 %v147, %v183
  %v200 = vlaneseq
  %v201 = vshrl.u32 %v200, 7
  %v202 = vsub.s32 3, %v201
  %v203 = vrot.slane %v59, %v202
  %vm204 = vcmp.eq.s32.totalorder %v43, %v203
  %vm205 = vcmp.eq.s32.totalorder %v44, %v203
  %vm206 = vcmp.eq.s32.totalorder %v45, %v203
  %vm207 = vcmp.eq.s32.totalorder %v46, %v203
  %vm208 = vcmp.eq.s32.totalorder %v47, %v203
  %vm209 = vcmp.eq.s32.totalorder %v48, %v203
  %vm210 = vcmp.eq.s32.totalorder %v49, %v203
  %vm211 = vcmp.eq.s32.totalorder %v50, %v203
  %vm212 = vcmp.eq.s32.totalorder %v51, %v203
  %vm213 = vcmp.eq.s32.totalorder %v52, %v203
  %vm214 = vcmp.eq.s32.totalorder %v53, %v203
  %vm215 = vcmp.eq.s32.totalorder %v54, %v203
  %vm216 = vcmp.eq.s32.totalorder %v55, %v203
  %vm217 = vcmp.eq.s32.totalorder %v56, %v203
  %vm218 = vcmp.eq.s32.totalorder %v57, %v203
  %vm219 = vcmp.eq.s32.totalorder %v58, %v203
  %v220 = vsel %vm204, 1, 0
  %v221 = vsel %vm205, 1, 0
  %v222 = vsel %vm206, 1, 0
  %v223 = vsel %vm207, 1, 0
  %v224 = vsel %vm208, 1, 0
  %v225 = vsel %vm209, 1, 0
  %v226 = vsel %vm210, 1, 0
  %v227 = vsel %vm211, 1, 0
  %v228 = vsel %vm212, 1, 0
  %v229 = vsel %vm213, 1, 0
  %v230 = vsel %vm214, 1, 0
  %v231 = vsel %vm215, 1, 0
  %v232 = vsel %vm216, 1, 0
  %v233 = vsel %vm217, 1, 0
  %v234 = vsel %vm218, 1, 0
  %v235 = vsel %vm219, 1, 0
  %v236 = vadd.s32 %v184, %v220
  %v237 = vadd.s32 %v185, %v221
  %v238 = vadd.s32 %v186, %v222
  %v239 = vadd.s32 %v187, %v223
  %v240 = vadd.s32 %v188, %v224
  %v241 = vadd.s32 %v189, %v225
  %v242 = vadd.s32 %v190, %v226
  %v243 = vadd.s32 %v191, %v227
  %v244 = vadd.s32 %v192, %v228
  %v245 = vadd.s32 %v193, %v229
  %v246 = vadd.s32 %v194, %v230
  %v247 = vadd.s32 %v195, %v231
  %v248 = vadd.s32 %v196, %v232
  %v249 = vadd.s32 %v197, %v233
  %v250 = vadd.s32 %v198, %v234
  %v251 = vadd.s32 %v199, %v235
  %v252 = vcvt.s32.f32 %v236
  %v253 = vcvt.s32.f32 %v237
  %v254 = vcvt.s32.f32 %v238
  %v255 = vcvt.s32.f32 %v239
  %v256 = vcvt.s32.f32 %v240
  %v257 = vcvt.s32.f32 %v241
  %v258 = vcvt.s32.f32 %v242
  %v259 = vcvt.s32.f32 %v243
  %v260 = vcvt.s32.f32 %v244
  %v261 = vcvt.s32.f32 %v245
  %v262 = vcvt.s32.f32 %v246
  %v263 = vcvt.s32.f32 %v247
  %v264 = vcvt.s32.f32 %v248
  %v265 = vcvt.s32.f32 %v249
  %v266 = vcvt.s32.f32 %v250
  %v267 = vcvt.s32.f32 %v251
  %v268 = vld [vmem:[%s1] sm:$0x1]
  %v270 = vlaneseq
  %v271 = vshrl.u32 %v270, 7
  %v272 = vsub.s32 0, %v271
  %v273 = vrot.slane %v268, %v272
  %v275 = vmul.f32 %v252, %v273
  %v276 = vmul.f32 %v253, %v273
  %v277 = vmul.f32 %v254, %v273
  %v278 = vmul.f32 %v255, %v273
  %v279 = vmul.f32 %v256, %v273
  %v280 = vmul.f32 %v257, %v273
  %v281 = vmul.f32 %v258, %v273
  %v282 = vmul.f32 %v259, %v273
  %v283 = vmul.f32 %v260, %v273
  %v284 = vmul.f32 %v261, %v273
  %v285 = vmul.f32 %v262, %v273
  %v286 = vmul.f32 %v263, %v273
  %v287 = vmul.f32 %v264, %v273
  %v288 = vmul.f32 %v265, %v273
  %v289 = vmul.f32 %v266, %v273
  %v290 = vmul.f32 %v267, %v273
  %291 = vst [vmem:[#allocation2] sm:$0xff] %v275
  %292 = vst [vmem:[#allocation2 + $0x8] sm:$0xff] %v276
  %293 = vst [vmem:[#allocation2 + $0x10] sm:$0xff] %v277
  %294 = vst [vmem:[#allocation2 + $0x18] sm:$0xff] %v278
  %295 = vst [vmem:[#allocation2 + $0x20] sm:$0xff] %v279
  %296 = vst [vmem:[#allocation2 + $0x28] sm:$0xff] %v280
  %297 = vst [vmem:[#allocation2 + $0x30] sm:$0xff] %v281
  %298 = vst [vmem:[#allocation2 + $0x38] sm:$0xff] %v282
  %299 = vst [vmem:[#allocation2 + $0x40] sm:$0xff] %v283
  %300 = vst [vmem:[#allocation2 + $0x48] sm:$0xff] %v284
  %301 = vst [vmem:[#allocation2 + $0x50] sm:$0xff] %v285
  %302 = vst [vmem:[#allocation2 + $0x58] sm:$0xff] %v286
  %303 = vst [vmem:[#allocation2 + $0x60] sm:$0xff] %v287
  %304 = vst [vmem:[#allocation2 + $0x68] sm:$0xff] %v288
  %305 = vst [vmem:[#allocation2 + $0x70] sm:$0xff] %v289
  %306 = vst [vmem:[#allocation2 + $0x78] sm:$0xff] %v290
  %307 = vmatprep.subr.mxu0 0.0
  %308 = vmatpush1.msra.mxu0 %v290
  %309 = vmatprep.subr.mxu0 0.0
  %310 = vmatpush1.msra.mxu0 %v289
  %311 = vmatprep.subr.mxu0 0.0
  %312 = vmatpush1.msra.mxu0 %v288
  %313 = vmatprep.subr.mxu0 0.0
  %314 = vmatpush1.msra.mxu0 %v287
  %315 = vmatprep.subr.mxu0 0.0
  %316 = vmatpush1.msra.mxu0 %v286
  %317 = vmatprep.subr.mxu0 0.0
  %318 = vmatpush1.msra.mxu0 %v285
  %319 = vmatprep.subr.mxu0 0.0
  %320 = vmatpush1.msra.mxu0 %v284
  %321 = vmatprep.subr.mxu0 0.0
  %322 = vmatpush1.msra.mxu0 %v283
  %323 = vmatprep.subr.mxu0 0.0
  %324 = vmatpush1.msra.mxu0 %v282
  %325 = vmatprep.subr.mxu0 0.0
  %326 = vmatpush1.msra.mxu0 %v281
  %327 = vmatprep.subr.mxu0 0.0
  %328 = vmatpush1.msra.mxu0 %v280
  %329 = vmatprep.subr.mxu0 0.0
  %330 = vmatpush1.msra.mxu0 %v279
  %331 = vmatprep.subr.mxu0 0.0
  %332 = vmatpush1.msra.mxu0 %v278
  %333 = vmatprep.subr.mxu0 0.0
  %334 = vmatpush1.msra.mxu0 %v277
  %335 = vmatprep.subr.mxu0 0.0
  %336 = vmatpush1.msra.mxu0 %v276
  %337 = vmatprep.subr.mxu0 0.0
  %338 = vmatpush1.msra.mxu0 %v275
  %339 = vmatprep.subr.mxu0 0.0
  %340 = vmatpush2.msra.mxu0 0.0
  %341 = vmatprep.subr.mxu0 0.0
  %342 = vmatpush2.msra.mxu0 0.0
  %343 = vmatprep.subr.mxu0 0.0
  %344 = vmatpush2.msra.mxu0 0.0
  %345 = vmatprep.subr.mxu0 0.0
  %346 = vmatpush2.msra.mxu0 0.0
  %347 = vmatprep.subr.mxu0 0.0
  %348 = vmatpush2.msra.mxu0 0.0
  %349 = vmatprep.subr.mxu0 0.0
  %350 = vmatpush2.msra.mxu0 0.0
  %351 = vmatprep.subr.mxu0 0.0
  %352 = vmatpush2.msra.mxu0 0.0
  %353 = vmatprep.subr.mxu0 0.0
  %354 = vmatpush2.msra.mxu0 0.0
  %355 = vmatprep.subr.mxu0 0.0
  %356 = vmatpush2.msra.mxu0 0.0
  %357 = vmatprep.subr.mxu0 0.0
  %358 = vmatpush2.msra.mxu0 0.0
  %359 = vmatprep.subr.mxu0 0.0
  %360 = vmatpush2.msra.mxu0 0.0
  %361 = vmatprep.subr.mxu0 0.0
  %362 = vmatpush2.msra.mxu0 0.0
  %363 = vmatprep.subr.mxu0 0.0
  %364 = vmatpush2.msra.mxu0 0.0
  %365 = vmatprep.subr.mxu0 0.0
  %366 = vmatpush2.msra.mxu0 0.0
  %367 = vmatprep.subr.mxu0 0.0
  %368 = vmatpush2.msra.mxu0 0.0
  %369 = vmatprep.subr.mxu0 0.0
  %370 = vmatpush2.msra.mxu0 0.0
  %371 = vmatprep.mubr.f32.mxu0 0.0
  %372 = vmatmul.mubr.f32.gmra.mxu0 %v40
  %v373 = vpop.f32.mrf.mxu0
  %v374 = vadd.f32 0.0, %v373
  %v375 = vpop.f32.mrf.mxu0
  %376 = vmatprep.mubr.f32.mxu0 0.0
  %377 = vmatmul.mubr.f32.gmra.mxu0 %v41
  %v378 = vpop.f32.mrf.mxu0
  %v379 = vadd.f32 0.0, %v378
  %v380 = vpop.f32.mrf.mxu0
  %381 = vdwg.mxu0
  %382 = vst [vmem:[#allocation3] sm:$0xff] %v374
  %383 = vst [vmem:[#allocation3 + $0x8] sm:$0xff] %v379
  %v384 = vld [vmem:[%s3] sm:$0xff]
  %v385 = vld [vmem:[%s3 + $0x8] sm:$0xff]
  %v386 = vld [vmem:[%s3 + $0x10] sm:$0xff]
  %v387 = vld [vmem:[%s3 + $0x18] sm:$0xff]
  %v388 = vld [vmem:[#allocation3] sm:$0xff]
  %v389 = vld [vmem:[#allocation3 + $0x8] sm:$0xff]
  %v390 = vld [vmem:[%s4] sm:$0xff]
  %v391 = vld [vmem:[%s4 + $0x8] sm:$0xff]
  %v392 = vld [vmem:[%s4 + $0x10] sm:$0xff]
  %v393 = vld [vmem:[%s4 + $0x18] sm:$0xff]
  %vm394 = vcmask 130048
  %v396 = vsel %vm394, %v390, 0
  %v399 = vsel %vm394, %v391, 0
  %v402 = vsel %vm394, %v392, 0
  %v405 = vsel %vm394, %v393, 0
  %407 = vmatprep.subr.mxu0 0.0
  %408 = vmatpush1.msra.mxu0 0.0
  %409 = vmatprep.subr.mxu0 0.0
  %410 = vmatpush1.msra.mxu0 0.0
  %411 = vmatprep.subr.mxu0 0.0
  %412 = vmatpush1.msra.mxu0 0.0
  %413 = vmatprep.subr.mxu0 0.0
  %414 = vmatpush1.msra.mxu0 0.0
  %415 = vmatprep.subr.mxu0 0.0
  %416 = vmatpush1.msra.mxu0 0.0
  %417 = vmatprep.subr.mxu0 0.0
  %418 = vmatpush1.msra.mxu0 0.0
  %419 = vmatprep.subr.mxu0 0.0
  %420 = vmatpush1.msra.mxu0 0.0
  %421 = vmatprep.subr.mxu0 0.0
  %422 = vmatpush1.msra.mxu0 0.0
  %423 = vmatprep.subr.mxu0 0.0
  %424 = vmatpush1.msra.mxu0 0.0
  %425 = vmatprep.subr.mxu0 0.0
  %426 = vmatpush1.msra.mxu0 0.0
  %427 = vmatprep.subr.mxu0 0.0
  %428 = vmatpush1.msra.mxu0 0.0
  %429 = vmatprep.subr.mxu0 0.0
  %430 = vmatpush1.msra.mxu0 0.0
  %431 = vmatprep.subr.mxu0 0.0
  %432 = vmatpush1.msra.mxu0 0.0
  %433 = vmatprep.subr.mxu0 0.0
  %434 = vmatpush1.msra.mxu0 0.0
  %435 = vmatprep.subr.mxu0 0.0
  %436 = vmatpush1.msra.mxu0 %v41
  %437 = vmatprep.subr.mxu0 0.0
  %438 = vmatpush1.msra.mxu0 %v40
  %439 = vmatprep.subr.mxu0 0.0
  %440 = vmatpush2.msra.mxu0 0.0
  %441 = vmatprep.subr.mxu0 0.0
  %442 = vmatpush2.msra.mxu0 0.0
  %443 = vmatprep.subr.mxu0 0.0
  %444 = vmatpush2.msra.mxu0 0.0
  %445 = vmatprep.subr.mxu0 0.0
  %446 = vmatpush2.msra.mxu0 0.0
  %447 = vmatprep.subr.mxu0 0.0
  %448 = vmatpush2.msra.mxu0 0.0
  %449 = vmatprep.subr.mxu0 0.0
  %450 = vmatpush2.msra.mxu0 0.0
  %451 = vmatprep.subr.mxu0 0.0
  %452 = vmatpush2.msra.mxu0 0.0
  %453 = vmatprep.subr.mxu0 0.0
  %454 = vmatpush2.msra.mxu0 0.0
  %455 = vmatprep.subr.mxu0 0.0
  %456 = vmatpush2.msra.mxu0 0.0
  %457 = vmatprep.subr.mxu0 0.0
  %458 = vmatpush2.msra.mxu0 0.0
  %459 = vmatprep.subr.mxu0 0.0
  %460 = vmatpush2.msra.mxu0 0.0
  %461 = vmatprep.subr.mxu0 0.0
  %462 = vmatpush2.msra.mxu0 0.0
  %463 = vmatprep.subr.mxu0 0.0
  %464 = vmatpush2.msra.mxu0 0.0
  %465 = vmatprep.subr.mxu0 0.0
  %466 = vmatpush2.msra.mxu0 0.0
  %467 = vmatprep.subr.mxu0 0.0
  %468 = vmatpush2.msra.mxu0 0.0
  %469 = vmatprep.subr.mxu0 0.0
  %470 = vmatpush2.msra.mxu0 0.0
  %471 = vmatprep.mubr.f32.mxu0 0.0
  %472 = vmatmul.mubr.f32.gmra.mxu0 %v396
  %v473 = vpop.f32.mrf.mxu0
  %v474 = vadd.f32 0.0, %v473
  %v475 = vpop.f32.mrf.mxu0
  %476 = vmatprep.mubr.f32.mxu0 0.0
  %477 = vmatmul.mubr.f32.gmra.mxu0 %v399
  %v478 = vpop.f32.mrf.mxu0
  %v479 = vadd.f32 0.0, %v478
  %v480 = vpop.f32.mrf.mxu0
  %481 = vmatprep.mubr.f32.mxu0 0.0
  %482 = vmatmul.mubr.f32.gmra.mxu0 %v402
  %v483 = vpop.f32.mrf.mxu0
  %v484 = vadd.f32 0.0, %v483
  %v485 = vpop.f32.mrf.mxu0
  %486 = vmatprep.mubr.f32.mxu0 0.0
  %487 = vmatmul.mubr.f32.gmra.mxu0 %v405
  %v488 = vpop.f32.mrf.mxu0
  %v489 = vadd.f32 0.0, %v488
  %v490 = vpop.f32.mrf.mxu0
  %491 = vdwg.mxu0
  %v493 = vsel %vm394, %v384, 0
  %v496 = vsel %vm394, %v385, 0
  %v499 = vsel %vm394, %v386, 0
  %v502 = vsel %vm394, %v387, 0
  %504 = vmatprep.subr.mxu0 0.0
  %505 = vmatpush1.msra.mxu0 0.0
  %506 = vmatprep.subr.mxu0 0.0
  %507 = vmatpush1.msra.mxu0 0.0
  %508 = vmatprep.subr.mxu0 0.0
  %509 = vmatpush1.msra.mxu0 0.0
  %510 = vmatprep.subr.mxu0 0.0
  %511 = vmatpush1.msra.mxu0 0.0
  %512 = vmatprep.subr.mxu0 0.0
  %513 = vmatpush1.msra.mxu0 0.0
  %514 = vmatprep.subr.mxu0 0.0
  %515 = vmatpush1.msra.mxu0 0.0
  %516 = vmatprep.subr.mxu0 0.0
  %517 = vmatpush1.msra.mxu0 0.0
  %518 = vmatprep.subr.mxu0 0.0
  %519 = vmatpush1.msra.mxu0 0.0
  %520 = vmatprep.subr.mxu0 0.0
  %521 = vmatpush1.msra.mxu0 0.0
  %522 = vmatprep.subr.mxu0 0.0
  %523 = vmatpush1.msra.mxu0 0.0
  %524 = vmatprep.subr.mxu0 0.0
  %525 = vmatpush1.msra.mxu0 0.0
  %526 = vmatprep.subr.mxu0 0.0
  %527 = vmatpush1.msra.mxu0 0.0
  %528 = vmatprep.subr.mxu0 0.0
  %529 = vmatpush1.msra.mxu0 0.0
  %530 = vmatprep.subr.mxu0 0.0
  %531 = vmatpush1.msra.mxu0 0.0
  %532 = vmatprep.subr.mxu0 0.0
  %533 = vmatpush1.msra.mxu0 %v389
  %534 = vmatprep.subr.mxu0 0.0
  %535 = vmatpush1.msra.mxu0 %v388
  %536 = vmatprep.subr.mxu0 0.0
  %537 = vmatpush2.msra.mxu0 0.0
  %538 = vmatprep.subr.mxu0 0.0
  %539 = vmatpush2.msra.mxu0 0.0
  %540 = vmatprep.subr.mxu0 0.0
  %541 = vmatpush2.msra.mxu0 0.0
  %542 = vmatprep.subr.mxu0 0.0
  %543 = vmatpush2.msra.mxu0 0.0
  %544 = vmatprep.subr.mxu0 0.0
  %545 = vmatpush2.msra.mxu0 0.0
  %546 = vmatprep.subr.mxu0 0.0
  %547 = vmatpush2.msra.mxu0 0.0
  %548 = vmatprep.subr.mxu0 0.0
  %549 = vmatpush2.msra.mxu0 0.0
  %550 = vmatprep.subr.mxu0 0.0
  %551 = vmatpush2.msra.mxu0 0.0
  %552 = vmatprep.subr.mxu0 0.0
  %553 = vmatpush2.msra.mxu0 0.0
  %554 = vmatprep.subr.mxu0 0.0
  %555 = vmatpush2.msra.mxu0 0.0
  %556 = vmatprep.subr.mxu0 0.0
  %557 = vmatpush2.msra.mxu0 0.0
  %558 = vmatprep.subr.mxu0 0.0
  %559 = vmatpush2.msra.mxu0 0.0
  %560 = vmatprep.subr.mxu0 0.0
  %561 = vmatpush2.msra.mxu0 0.0
  %562 = vmatprep.subr.mxu0 0.0
  %563 = vmatpush2.msra.mxu0 0.0
  %564 = vmatprep.subr.mxu0 0.0
  %565 = vmatpush2.msra.mxu0 0.0
  %566 = vmatprep.subr.mxu0 0.0
  %567 = vmatpush2.msra.mxu0 0.0
  %568 = vmatprep.mubr.f32.mxu0 0.0
  %569 = vmatmul.mubr.f32.gmra.mxu0 %v493
  %v570 = vpop.f32.mrf.mxu0
  %v571 = vadd.f32 %v474, %v570
  %v572 = vpop.f32.mrf.mxu0
  %573 = vmatprep.mubr.f32.mxu0 0.0
  %574 = vmatmul.mubr.f32.gmra.mxu0 %v496
  %v575 = vpop.f32.mrf.mxu0
  %v576 = vadd.f32 %v479, %v575
  %v577 = vpop.f32.mrf.mxu0
  %578 = vmatprep.mubr.f32.mxu0 0.0
  %579 = vmatmul.mubr.f32.gmra.mxu0 %v499
  %v580 = vpop.f32.mrf.mxu0
  %v581 = vadd.f32 %v484, %v580
  %v582 = vpop.f32.mrf.mxu0
  %583 = vmatprep.mubr.f32.mxu0 0.0
  %584 = vmatmul.mubr.f32.gmra.mxu0 %v502
  %v585 = vpop.f32.mrf.mxu0
  %v586 = vadd.f32 %v489, %v585
  %v587 = vpop.f32.mrf.mxu0
  %588 = vdwg.mxu0
  %v589 = vld [vmem:[%s5] sm:$0xff]
  %v590 = vld [vmem:[%s5 + $0x8] sm:$0xff]
  %v591 = vld [vmem:[%s5 + $0x10] sm:$0xff]
  %v592 = vld [vmem:[%s5 + $0x18] sm:$0xff]
  %594 = vset.pattern.permute.xlu0 0
  %595 = vperm.xlu0 %594, %v589
  %v596 = vpop.permute.xlu0 %595
  %599 = vset.pattern.permute.xlu0 0
  %600 = vperm.xlu0 %599, %v590
  %v601 = vpop.permute.xlu0 %600
  %604 = vset.pattern.permute.xlu0 0
  %605 = vperm.xlu0 %604, %v591
  %v606 = vpop.permute.xlu0 %605
  %609 = vset.pattern.permute.xlu0 0
  %610 = vperm.xlu0 %609, %v592
  %v611 = vpop.permute.xlu0 %610
  %v613 = vadd.f32 %v571, %v596
  %v614 = vadd.f32 %v576, %v601
  %v615 = vadd.f32 %v581, %v606
  %v616 = vadd.f32 %v586, %v611
  %v617 = vmax.f32 %v613, 0.0
  %v618 = vmax.f32 %v614, 0.0
  %v619 = vmax.f32 %v615, 0.0
  %v620 = vmax.f32 %v616, 0.0
  %v621 = vld [vmem:[%s6] sm:$0xff]
  %v622 = vld [vmem:[%s6 + $0x8] sm:$0xff]
  %vm623 = vcmask 261120
  %v625 = vsel %vm623, %v621, 0
  %v628 = vsel %vm623, %v622, 0
  %630 = vmatprep.subr.mxu0 0.0
  %631 = vmatpush1.msra.mxu0 0.0
  %632 = vmatprep.subr.mxu0 0.0
  %633 = vmatpush1.msra.mxu0 0.0
  %634 = vmatprep.subr.mxu0 0.0
  %635 = vmatpush1.msra.mxu0 0.0
  %636 = vmatprep.subr.mxu0 0.0
  %637 = vmatpush1.msra.mxu0 0.0
  %638 = vmatprep.subr.mxu0 0.0
  %639 = vmatpush1.msra.mxu0 0.0
  %640 = vmatprep.subr.mxu0 0.0
  %641 = vmatpush1.msra.mxu0 0.0
  %642 = vmatprep.subr.mxu0 0.0
  %643 = vmatpush1.msra.mxu0 0.0
  %644 = vmatprep.subr.mxu0 0.0
  %645 = vmatpush1.msra.mxu0 0.0
  %646 = vmatprep.subr.mxu0 0.0
  %647 = vmatpush1.msra.mxu0 0.0
  %648 = vmatprep.subr.mxu0 0.0
  %649 = vmatpush1.msra.mxu0 0.0
  %650 = vmatprep.subr.mxu0 0.0
  %651 = vmatpush1.msra.mxu0 0.0
  %652 = vmatprep.subr.mxu0 0.0
  %653 = vmatpush1.msra.mxu0 0.0
  %654 = vmatprep.subr.mxu0 0.0
  %655 = vmatpush1.msra.mxu0 %v620
  %656 = vmatprep.subr.mxu0 0.0
  %657 = vmatpush1.msra.mxu0 %v619
  %658 = vmatprep.subr.mxu0 0.0
  %659 = vmatpush1.msra.mxu0 %v618
  %660 = vmatprep.subr.mxu0 0.0
  %661 = vmatpush1.msra.mxu0 %v617
  %662 = vmatprep.subr.mxu0 0.0
  %663 = vmatpush2.msra.mxu0 0.0
  %664 = vmatprep.subr.mxu0 0.0
  %665 = vmatpush2.msra.mxu0 0.0
  %666 = vmatprep.subr.mxu0 0.0
  %667 = vmatpush2.msra.mxu0 0.0
  %668 = vmatprep.subr.mxu0 0.0
  %669 = vmatpush2.msra.mxu0 0.0
  %670 = vmatprep.subr.mxu0 0.0
  %671 = vmatpush2.msra.mxu0 0.0
  %672 = vmatprep.subr.mxu0 0.0
  %673 = vmatpush2.msra.mxu0 0.0
  %674 = vmatprep.subr.mxu0 0.0
  %675 = vmatpush2.msra.mxu0 0.0
  %676 = vmatprep.subr.mxu0 0.0
  %677 = vmatpush2.msra.mxu0 0.0
  %678 = vmatprep.subr.mxu0 0.0
  %679 = vmatpush2.msra.mxu0 0.0
  %680 = vmatprep.subr.mxu0 0.0
  %681 = vmatpush2.msra.mxu0 0.0
  %682 = vmatprep.subr.mxu0 0.0
  %683 = vmatpush2.msra.mxu0 0.0
  %684 = vmatprep.subr.mxu0 0.0
  %685 = vmatpush2.msra.mxu0 0.0
  %686 = vmatprep.subr.mxu0 0.0
  %687 = vmatpush2.msra.mxu0 0.0
  %688 = vmatprep.subr.mxu0 0.0
  %689 = vmatpush2.msra.mxu0 0.0
  %690 = vmatprep.subr.mxu0 0.0
  %691 = vmatpush2.msra.mxu0 0.0
  %692 = vmatprep.subr.mxu0 0.0
  %693 = vmatpush2.msra.mxu0 0.0
  %694 = vmatprep.mubr.f32.mxu0 0.0
  %695 = vmatmul.mubr.f32.gmra.mxu0 %v625
  %v696 = vpop.f32.mrf.mxu0
  %v697 = vadd.f32 0.0, %v696
  %v698 = vpop.f32.mrf.mxu0
  %699 = vmatprep.mubr.f32.mxu0 0.0
  %700 = vmatmul.mubr.f32.gmra.mxu0 %v628
  %v701 = vpop.f32.mrf.mxu0
  %v702 = vadd.f32 0.0, %v701
  %v703 = vpop.f32.mrf.mxu0
  %704 = vdwg.mxu0
  %v705 = vld [vmem:[%s7] sm:$0xff]
  %v706 = vld [vmem:[%s7 + $0x8] sm:$0xff]
  %v708 = vsel %vm623, %v705, 0
  %v711 = vsel %vm623, %v706, 0
  %713 = vmatprep.subr.mxu0 0.0
  %714 = vmatpush1.msra.mxu0 0.0
  %715 = vmatprep.subr.mxu0 0.0
  %716 = vmatpush1.msra.mxu0 0.0
  %717 = vmatprep.subr.mxu0 0.0
  %718 = vmatpush1.msra.mxu0 0.0
  %719 = vmatprep.subr.mxu0 0.0
  %720 = vmatpush1.msra.mxu0 0.0
  %721 = vmatprep.subr.mxu0 0.0
  %722 = vmatpush1.msra.mxu0 0.0
  %723 = vmatprep.subr.mxu0 0.0
  %724 = vmatpush1.msra.mxu0 0.0
  %725 = vmatprep.subr.mxu0 0.0
  %726 = vmatpush1.msra.mxu0 0.0
  %727 = vmatprep.subr.mxu0 0.0
  %728 = vmatpush1.msra.mxu0 0.0
  %729 = vmatprep.subr.mxu0 0.0
  %730 = vmatpush1.msra.mxu0 0.0
  %731 = vmatprep.subr.mxu0 0.0
  %732 = vmatpush1.msra.mxu0 0.0
  %733 = vmatprep.subr.mxu0 0.0
  %734 = vmatpush1.msra.mxu0 0.0
  %735 = vmatprep.subr.mxu0 0.0
  %736 = vmatpush1.msra.mxu0 0.0
  %737 = vmatprep.subr.mxu0 0.0
  %738 = vmatpush1.msra.mxu0 %v620
  %739 = vmatprep.subr.mxu0 0.0
  %740 = vmatpush1.msra.mxu0 %v619
  %741 = vmatprep.subr.mxu0 0.0
  %742 = vmatpush1.msra.mxu0 %v618
  %743 = vmatprep.subr.mxu0 0.0
  %744 = vmatpush1.msra.mxu0 %v617
  %745 = vmatprep.subr.mxu0 0.0
  %746 = vmatpush2.msra.mxu0 0.0
  %747 = vmatprep.subr.mxu0 0.0
  %748 = vmatpush2.msra.mxu0 0.0
  %749 = vmatprep.subr.mxu0 0.0
  %750 = vmatpush2.msra.mxu0 0.0
  %751 = vmatprep.subr.mxu0 0.0
  %752 = vmatpush2.msra.mxu0 0.0
  %753 = vmatprep.subr.mxu0 0.0
  %754 = vmatpush2.msra.mxu0 0.0
  %755 = vmatprep.subr.mxu0 0.0
  %756 = vmatpush2.msra.mxu0 0.0
  %757 = vmatprep.subr.mxu0 0.0
  %758 = vmatpush2.msra.mxu0 0.0
  %759 = vmatprep.subr.mxu0 0.0
  %760 = vmatpush2.msra.mxu0 0.0
  %761 = vmatprep.subr.mxu0 0.0
  %762 = vmatpush2.msra.mxu0 0.0
  %763 = vmatprep.subr.mxu0 0.0
  %764 = vmatpush2.msra.mxu0 0.0
  %765 = vmatprep.subr.mxu0 0.0
  %766 = vmatpush2.msra.mxu0 0.0
  %767 = vmatprep.subr.mxu0 0.0
  %768 = vmatpush2.msra.mxu0 0.0
  %769 = vmatprep.subr.mxu0 0.0
  %770 = vmatpush2.msra.mxu0 0.0
  %771 = vmatprep.subr.mxu0 0.0
  %772 = vmatpush2.msra.mxu0 0.0
  %773 = vmatprep.subr.mxu0 0.0
  %774 = vmatpush2.msra.mxu0 0.0
  %775 = vmatprep.subr.mxu0 0.0
  %776 = vmatpush2.msra.mxu0 0.0
  %777 = vmatprep.mubr.f32.mxu0 0.0
  %778 = vmatmul.mubr.f32.gmra.mxu0 %v708
  %v779 = vpop.f32.mrf.mxu0
  %v780 = vadd.f32 0.0, %v779
  %v781 = vpop.f32.mrf.mxu0
  %782 = vmatprep.mubr.f32.mxu0 0.0
  %783 = vmatmul.mubr.f32.gmra.mxu0 %v711
  %v784 = vpop.f32.mrf.mxu0
  %v785 = vadd.f32 0.0, %v784
  %v786 = vpop.f32.mrf.mxu0
  %787 = vdwg.mxu0
  %v788 = vld [vmem:[#allocation2] sm:$0xff]
  %v789 = vld [vmem:[#allocation2 + $0x8] sm:$0xff]
  %v790 = vld [vmem:[#allocation2 + $0x10] sm:$0xff]
  %v791 = vld [vmem:[#allocation2 + $0x18] sm:$0xff]
  %v792 = vld [vmem:[#allocation2 + $0x20] sm:$0xff]
  %v793 = vld [vmem:[#allocation2 + $0x28] sm:$0xff]
  %v794 = vld [vmem:[#allocation2 + $0x30] sm:$0xff]
  %v795 = vld [vmem:[#allocation2 + $0x38] sm:$0xff]
  %v796 = vld [vmem:[#allocation2 + $0x40] sm:$0xff]
  %v797 = vld [vmem:[#allocation2 + $0x48] sm:$0xff]
  %v798 = vld [vmem:[#allocation2 + $0x50] sm:$0xff]
  %v799 = vld [vmem:[#allocation2 + $0x58] sm:$0xff]
  %v800 = vld [vmem:[#allocation2 + $0x60] sm:$0xff]
  %v801 = vld [vmem:[#allocation2 + $0x68] sm:$0xff]
  %v802 = vld [vmem:[#allocation2 + $0x70] sm:$0xff]
  %v803 = vld [vmem:[#allocation2 + $0x78] sm:$0xff]
  %804 = vmatprep.subr.mxu0 0.0
  %805 = vmatpush1.msra.mxu0 %v803
  %806 = vmatprep.subr.mxu0 0.0
  %807 = vmatpush1.msra.mxu0 %v802
  %808 = vmatprep.subr.mxu0 0.0
  %809 = vmatpush1.msra.mxu0 %v801
  %810 = vmatprep.subr.mxu0 0.0
  %811 = vmatpush1.msra.mxu0 %v800
  %812 = vmatprep.subr.mxu0 0.0
  %813 = vmatpush1.msra.mxu0 %v799
  %814 = vmatprep.subr.mxu0 0.0
  %815 = vmatpush1.msra.mxu0 %v798
  %816 = vmatprep.subr.mxu0 0.0
  %817 = vmatpush1.msra.mxu0 %v797
  %818 = vmatprep.subr.mxu0 0.0
  %819 = vmatpush1.msra.mxu0 %v796
  %820 = vmatprep.subr.mxu0 0.0
  %821 = vmatpush1.msra.mxu0 %v795
  %822 = vmatprep.subr.mxu0 0.0
  %823 = vmatpush1.msra.mxu0 %v794
  %824 = vmatprep.subr.mxu0 0.0
  %825 = vmatpush1.msra.mxu0 %v793
  %826 = vmatprep.subr.mxu0 0.0
  %827 = vmatpush1.msra.mxu0 %v792
  %828 = vmatprep.subr.mxu0 0.0
  %829 = vmatpush1.msra.mxu0 %v791
  %830 = vmatprep.subr.mxu0 0.0
  %831 = vmatpush1.msra.mxu0 %v790
  %832 = vmatprep.subr.mxu0 0.0
  %833 = vmatpush1.msra.mxu0 %v789
  %834 = vmatprep.subr.mxu0 0.0
  %835 = vmatpush1.msra.mxu0 %v788
  %836 = vmatprep.subr.mxu0 0.0
  %837 = vmatpush2.msra.mxu0 0.0
  %838 = vmatprep.subr.mxu0 0.0
  %839 = vmatpush2.msra.mxu0 0.0
  %840 = vmatprep.subr.mxu0 0.0
  %841 = vmatpush2.msra.mxu0 0.0
  %842 = vmatprep.subr.mxu0 0.0
  %843 = vmatpush2.msra.mxu0 0.0
  %844 = vmatprep.subr.mxu0 0.0
  %845 = vmatpush2.msra.mxu0 0.0
  %846 = vmatprep.subr.mxu0 0.0
  %847 = vmatpush2.msra.mxu0 0.0
  %848 = vmatprep.subr.mxu0 0.0
  %849 = vmatpush2.msra.mxu0 0.0
  %850 = vmatprep.subr.mxu0 0.0
  %851 = vmatpush2.msra.mxu0 0.0
  %852 = vmatprep.subr.mxu0 0.0
  %853 = vmatpush2.msra.mxu0 0.0
  %854 = vmatprep.subr.mxu0 0.0
  %855 = vmatpush2.msra.mxu0 0.0
  %856 = vmatprep.subr.mxu0 0.0
  %857 = vmatpush2.msra.mxu0 0.0
  %858 = vmatprep.subr.mxu0 0.0
  %859 = vmatpush2.msra.mxu0 0.0
  %860 = vmatprep.subr.mxu0 0.0
  %861 = vmatpush2.msra.mxu0 0.0
  %862 = vmatprep.subr.mxu0 0.0
  %863 = vmatpush2.msra.mxu0 0.0
  %864 = vmatprep.subr.mxu0 0.0
  %865 = vmatpush2.msra.mxu0 0.0
  %866 = vmatprep.subr.mxu0 0.0
  %867 = vmatpush2.msra.mxu0 0.0
  %868 = vmatprep.mubr.f32.mxu0 0.0
  %869 = vmatmul.mubr.f32.gmra.mxu0 %v697
  %v870 = vpop.f32.mrf.mxu0
  %v871 = vadd.f32 %v780, %v870
  %v872 = vpop.f32.mrf.mxu0
  %873 = vmatprep.mubr.f32.mxu0 0.0
  %874 = vmatmul.mubr.f32.gmra.mxu0 %v702
  %v875 = vpop.f32.mrf.mxu0
  %v876 = vadd.f32 %v785, %v875
  %v877 = vpop.f32.mrf.mxu0
  %878 = vdwg.mxu0
  %v879 = vld [vmem:[%s8] sm:$0xff]
  %v880 = vld [vmem:[%s8 + $0x8] sm:$0xff]
  %882 = vset.pattern.permute.xlu0 0
  %883 = vperm.xlu0 %882, %v879
  %v884 = vpop.permute.xlu0 %883
  %887 = vset.pattern.permute.xlu0 0
  %888 = vperm.xlu0 %887, %v880
  %v889 = vpop.permute.xlu0 %888
  %v891 = vadd.f32 %v871, %v884
  %v892 = vadd.f32 %v876, %v889
  %v893 = vmax.f32 %v891, 0.0
  %v894 = vmax.f32 %v892, 0.0
  %v895 = vld [vmem:[%s9] sm:$0x1]
  %v896 = vld [vmem:[#allocation4] sm:$0x1]
  %898 = vset.pattern.permute.xlu0 0
  %899 = vperm.xlu0 %898, %v896
  %v900 = vpop.permute.xlu0 %899
  %v902 = vlaneseq
  %v903 = vshrl.u32 %v902, 7
  %v904 = vsub.s32 0, %v903
  %v905 = vrot.slane %v900, %v904
  %v907 = vsel %vm394, %v895, 0
  %909 = vmatprep.subr.mxu0 0.0
  %910 = vmatpush1.msra.mxu0 0.0
  %911 = vmatprep.subr.mxu0 0.0
  %912 = vmatpush1.msra.mxu0 0.0
  %913 = vmatprep.subr.mxu0 0.0
  %914 = vmatpush1.msra.mxu0 0.0
  %915 = vmatprep.subr.mxu0 0.0
  %916 = vmatpush1.msra.mxu0 0.0
  %917 = vmatprep.subr.mxu0 0.0
  %918 = vmatpush1.msra.mxu0 0.0
  %919 = vmatprep.subr.mxu0 0.0
  %920 = vmatpush1.msra.mxu0 0.0
  %921 = vmatprep.subr.mxu0 0.0
  %922 = vmatpush1.msra.mxu0 0.0
  %923 = vmatprep.subr.mxu0 0.0
  %924 = vmatpush1.msra.mxu0 0.0
  %925 = vmatprep.subr.mxu0 0.0
  %926 = vmatpush1.msra.mxu0 0.0
  %927 = vmatprep.subr.mxu0 0.0
  %928 = vmatpush1.msra.mxu0 0.0
  %929 = vmatprep.subr.mxu0 0.0
  %930 = vmatpush1.msra.mxu0 0.0
  %931 = vmatprep.subr.mxu0 0.0
  %932 = vmatpush1.msra.mxu0 0.0
  %933 = vmatprep.subr.mxu0 0.0
  %934 = vmatpush1.msra.mxu0 0.0
  %935 = vmatprep.subr.mxu0 0.0
  %936 = vmatpush1.msra.mxu0 0.0
  %937 = vmatprep.subr.mxu0 0.0
  %938 = vmatpush1.msra.mxu0 %v894
  %939 = vmatprep.subr.mxu0 0.0
  %940 = vmatpush1.msra.mxu0 %v893
  %941 = vmatprep.subr.mxu0 0.0
  %942 = vmatpush2.msra.mxu0 0.0
  %943 = vmatprep.subr.mxu0 0.0
  %944 = vmatpush2.msra.mxu0 0.0
  %945 = vmatprep.subr.mxu0 0.0
  %946 = vmatpush2.msra.mxu0 0.0
  %947 = vmatprep.subr.mxu0 0.0
  %948 = vmatpush2.msra.mxu0 0.0
  %949 = vmatprep.subr.mxu0 0.0
  %950 = vmatpush2.msra.mxu0 0.0
  %951 = vmatprep.subr.mxu0 0.0
  %952 = vmatpush2.msra.mxu0 0.0
  %953 = vmatprep.subr.mxu0 0.0
  %954 = vmatpush2.msra.mxu0 0.0
  %955 = vmatprep.subr.mxu0 0.0
  %956 = vmatpush2.msra.mxu0 0.0
  %957 = vmatprep.subr.mxu0 0.0
  %958 = vmatpush2.msra.mxu0 0.0
  %959 = vmatprep.subr.mxu0 0.0
  %960 = vmatpush2.msra.mxu0 0.0
  %961 = vmatprep.subr.mxu0 0.0
  %962 = vmatpush2.msra.mxu0 0.0
  %963 = vmatprep.subr.mxu0 0.0
  %964 = vmatpush2.msra.mxu0 0.0
  %965 = vmatprep.subr.mxu0 0.0
  %966 = vmatpush2.msra.mxu0 0.0
  %967 = vmatprep.subr.mxu0 0.0
  %968 = vmatpush2.msra.mxu0 0.0
  %969 = vmatprep.subr.mxu0 0.0
  %970 = vmatpush2.msra.mxu0 0.0
  %971 = vmatprep.subr.mxu0 0.0
  %972 = vmatpush2.msra.mxu0 0.0
  %973 = vmatprep.mubr.f32.mxu0 0.0
  %974 = vmatmul.mubr.f32.gmra.mxu0 %v907
  %v975 = vpop.f32.mrf.mxu0
  %v976 = vadd.f32 %v905, %v975
  %v977 = vpop.f32.mrf.mxu0
  %978 = vdwg.mxu0
  %979 = vst [vmem:[%s11] sm:$0x1] %v976
  // Predicated region
  $region46: #{sage_ids_forward.1} parent=0 // pred_check
    _
  $region47: #{sage_ids_forward.1} parent=0 // pred_check_branch
    %981 = sbr.rel (0) target = $region49
  $region48: #{sage_ids_forward.1} parent=0 // pred_region
    _
  $region49: #{sage_ids_forward.1} parent=0 // pred_fallthru
    _
  // Predicated region
  $region50: #{sage_ids_forward.1} parent=0 // pred_check
    _
  $region51: #{sage_ids_forward.1} parent=0 // pred_check_branch
    %983 = sbr.rel (0) target = $region53
  $region52: #{sage_ids_forward.1} parent=0 // pred_region
    _
  $region53: #{sage_ids_forward.1} parent=0 // pred_fallthru
    _

</llo_original>
